<compile_context>
chip_gen: v7x
topology: tpu7x:2x2x1
jax: 0.10.0
libtpu: 0.0.40
codegen_flags: <defaults>
</compile_context>

<pallas_src>
import jax
import jax.numpy as jnp
from jax.experimental import pallas as pl
from jax.experimental.pallas import tpu as pltpu


def _round_up(x, m):
    return ((x + m - 1) // m) * m


def _vmem_capacity_bytes():
    """Physical VMEM of the current TPU generation (conservative fallback)."""
    try:
        info = pltpu.get_tpu_info()
        cap = getattr(info, "vmem_capacity_bytes", None)
        if cap:
            return int(cap)
    except Exception:
        pass
    return 64 * 1024 * 1024  # v7x per-TensorCore value (most restrictive)


def _tile_plan(n):
    """Return (TM, TK, N_pad), (8,128)/MXU aligned.

    >=2 row tiles whenever N_pad > 128 (feeds both v7x TensorCores); the
    mid-size class keeps the padding granule small because zero-padding
    multiplies the dominant O(N^2) A_hat HBM stream.
    """
    n128 = _round_up(n, 128)
    if n128 <= 512:
        tm = 128 if n128 > 128 else n128
        return tm, n128, n128
    if n128 <= 2048:
        tm, tk = 256, 256
    else:
        tm, tk = 512, 1024
    return tm, tk, _round_up(n, max(tm, tk))


# ------------------------------- kernel --------------------------------------


def _make_agg_kernel(tk, xw_resident):
    def kernel(a_ref, xw_ref, ba_ref, o_ref, acc_ref):
        # grid = (row_tiles, k_tiles); k is the reduction over source nodes.
        k = pl.program_id(1)

        @pl.when(k == 0)
        def _():
            acc_ref[...] = jnp.zeros_like(acc_ref)

        # A_hat streams from HBM in a narrow dtype (bf16 default); upcast to
        # f32 on the VPU so the MXU matmul + accumulation stay full precision.
        a_tile = a_ref[...].astype(jnp.float32)

        if xw_resident:
            # XW lives fully in VMEM; take the K-slice in-kernel.
            start = pl.multiple_of(k * tk, tk)
            xw_tile = xw_ref[pl.ds(start, tk), :]
        else:
            xw_tile = xw_ref[...]

        acc_ref[...] += jnp.dot(a_tile, xw_tile,
                                preferred_element_type=jnp.float32)

        @pl.when(k == pl.num_programs(1) - 1)
        def _():
            # Bias + PReLU epilogue in f32 on the accumulator; cast at store.
            h = acc_ref[...] + ba_ref[0:1, :]
            o_ref[...] = jnp.where(h > 0, h, ba_ref[1:2, :] * h).astype(o_ref.dtype)

    return kernel


# ------------------------------ wrappers --------------------------------------


def build_normalized_adjacency(edge_index, num_nodes):
    """Dense D^-1/2 (A + I) D^-1/2.  Graph is static -> build once and reuse."""
    src, dst = edge_index[0], edge_index[1]
    loop = jnp.arange(num_nodes, dtype=src.dtype)
    src = jnp.concatenate([src, loop])
    dst = jnp.concatenate([dst, loop])
    adj = jnp.zeros((num_nodes, num_nodes), jnp.float32).at[dst, src].add(1.0)
    deg = adj.sum(axis=1)
    dinv = jnp.where(deg > 0, 1.0 / jnp.sqrt(deg), 0.0)
    return dinv[:, None] * adj * dinv[None, :]


def encoder_apply_dense(x, a_hat, w, b, alpha, *, matmul_dtype=jnp.bfloat16):
    """prelu(A_hat @ (x @ W) + b) with a tiled Pallas aggregation kernel.

    matmul_dtype: storage/stream dtype of A_hat (bf16 default halves the
      dominant HBM traffic).  XW stays f32 and accumulation is always f32.
    """
    N, C_in = x.shape
    H = w.shape[1]
    f32 = jnp.float32

    TM, TK, N_pad = _tile_plan(N)
    H_pad = _round_up(H, 128)

    # Zero-pad to aligned shapes (padding contributes exact zeros).
    x_p = jnp.zeros((N_pad, C_in), f32).at[:N].set(x.astype(f32))
    w_p = jnp.zeros((C_in, H_pad), f32).at[:, :H].set(w.astype(f32))
    ba = jnp.zeros((2, H_pad), f32)
    ba = ba.at[0, :H].set(b.reshape(H)).at[1, :H].set(alpha.reshape(H))
    a_p = jnp.zeros((N_pad, N_pad), f32).at[:N, :N].set(a_hat).astype(matmul_dtype)

    # XW computed once; tiny GEMM handled fine by XLA, kept in f32 (accuracy).
    xw = jnp.dot(x_p, w_p, preferred_element_type=f32)

    # ---- VMEM budget (generation-aware) and XW residency decision ------------
    a_item = jnp.dtype(matmul_dtype).itemsize
    cap = _vmem_capacity_bytes()
    vmem_budget = min(int(cap * 0.75), 96 * 1024 * 1024)  # ~48 MiB v7x, 96 MiB v5e/v6e

    base_bytes = (
        2 * TM * TK * a_item      # A_hat tile, double-buffered
        + TM * TK * 4             # in-kernel f32 upcast of the A_hat tile
        + 2 * TM * H_pad * 4      # output tile, double-buffered
        + TM * H_pad * 4          # f32 accumulator scratch
        + 2 * 2 * H_pad * 4       # bias/alpha buffer
    )
    resident_xw_bytes = 2 * N_pad * H_pad * 4
    xw_resident = (base_bytes + resident_xw_bytes) <= vmem_budget

    if xw_resident:
        xw_spec = pl.BlockSpec((N_pad, H_pad), lambda i, k: (0, 0))
        xw_stream_bytes = N_pad * H_pad * 4                      # fetched once
    else:
        xw_spec = pl.BlockSpec((TK, H_pad), lambda i, k: (k, 0))
        xw_stream_bytes = (N_pad // TM) * N_pad * H_pad * 4      # refetched per row tile

    cost = pl.CostEstimate(
        flops=2 * N_pad * N_pad * H_pad,
        transcendentals=0,
        bytes_accessed=(
            N_pad * N_pad * a_item      # A_hat stream (dominant term)
            + xw_stream_bytes           # XW (resident vs streamed)
            + N_pad * H_pad * 4         # output write
            + 2 * H_pad * 4             # bias / alpha
        ),
    )

    out = pl.pallas_call(
        _make_agg_kernel(TK, xw_resident),
        out_shape=jax.ShapeDtypeStruct((N_pad, H_pad), f32),
        grid_spec=pltpu.PrefetchScalarGridSpec(
            num_scalar_prefetch=0,
            grid=(N_pad // TM, N_pad // TK),
            in_specs=[
                pl.BlockSpec((TM, TK), lambda i, k: (i, k)),     # A_hat tile
                xw_spec,                                         # XW (resident or K-slice)
                pl.BlockSpec((2, H_pad), lambda i, k: (0, 0)),   # bias + alpha
            ],
            out_specs=pl.BlockSpec((TM, H_pad), lambda i, k: (i, 0)),
            scratch_shapes=[pltpu.VMEM((TM, H_pad), jnp.float32)],
        ),
        compiler_params=pltpu.CompilerParams(
            dimension_semantics=("parallel", "arbitrary"),
            vmem_limit_bytes=vmem_budget,
        ),
        cost_estimate=cost,
    )(a_p, xw, ba)

    # Padded rows hold prelu(b); the slice below discards them.
    return out[:N, :H]


def encoder_forward(x, edge_index, w, b, alpha, *, matmul_dtype=jnp.bfloat16):
    a_hat = build_normalized_adjacency(edge_index, x.shape[0])
    return encoder_apply_dense(x, a_hat, w, b, alpha, matmul_dtype=matmul_dtype)


# ------------------------------- reference ------------------------------------


def _reference(x, edge_index, w, b, alpha, matmul_dtype=jnp.float32):
    a_hat = build_normalized_adjacency(edge_index, x.shape[0])
    # Quantize A_hat exactly like the kernel's HBM stream so the comparison
    # isolates kernel correctness from the (intentional) input quantization.
    a_hat = a_hat.astype(matmul_dtype).astype(jnp.float32)
    h = a_hat @ (x @ w) + b
    return jnp.where(h > 0, h, alpha * h)


if __name__ == "__main__":
    key = jax.random.PRNGKey(0)

    def _case(n_nodes, c_in, hidden, n_edges, k):
        kx, kw, ke = jax.random.split(k, 3)
        x = jax.random.normal(kx, (n_nodes, c_in), dtype=jnp.float32)
        edge_index = jax.random.randint(ke, (2, n_edges), 0, n_nodes, dtype=jnp.int32)
        limit = jnp.sqrt(6.0 / (c_in + hidden))
        w = jax.random.uniform(kw, (c_in, hidden), jnp.float32, -limit, limit)
        b = jnp.zeros((1, hidden), jnp.float32)
        alpha = jnp.full((1, hidden), 0.25, jnp.float32)
        return x, edge_index, w, b, alpha

    # 1) Toy module shapes, f32 A_hat stream: exact-semantics check.
    x, ei, w, b, alpha = _case(16, 8, 32, 40, key)
    out = jax.block_until_ready(
        encoder_forward(x, ei, w, b, alpha, matmul_dtype=jnp.float32))
    ref = _reference(x, ei, w, b, alpha, matmul_dtype=jnp.float32)
    assert jnp.allclose(out, ref, atol=1e-5, rtol=1e-5)

    # 2) Default bf16 A_hat stream vs identically-quantized reference.
    out = jax.block_until_ready(encoder_forward(x, ei, w, b, alpha))
    ref = _reference(x, ei, w, b, alpha, matmul_dtype=jnp.bfloat16)
    assert jnp.allclose(out, ref, atol=1e-5, rtol=1e-5)

    # 3) Larger graph: multi row-tile / multi K-step accumulator path.
    x2, ei2, w2, b2, alpha2 = _case(700, 8, 32, 3000, jax.random.PRNGKey(1))
    out2 = jax.block_until_ready(encoder_forward(x2, ei2, w2, b2, alpha2))
    ref2 = _reference(x2, ei2, w2, b2, alpha2, matmul_dtype=jnp.bfloat16)
    assert jnp.allclose(out2, ref2, atol=1e-4, rtol=1e-4)

    out2f = jax.block_until_ready(
        encoder_forward(x2, ei2, w2, b2, alpha2, matmul_dtype=jnp.float32))
    ref2f = _reference(x2, ei2, w2, b2, alpha2, matmul_dtype=jnp.float32)
    assert jnp.allclose(out2f, ref2f, atol=1e-4, rtol=1e-4)

    print("KERNEL_OK")
</pallas_src>

<mosaic_0001>
module attributes {stable_mosaic.version = 11 : i64} {
  func.func @kernel(%arg0: i32, %arg1: i32, %arg2: memref<128x128xf32, #tpu.memory_space<vmem>>, %arg3: memref<128x128xf32, #tpu.memory_space<vmem>>, %arg4: memref<2x128xf32, #tpu.memory_space<vmem>>, %arg5: memref<128x128xf32, #tpu.memory_space<vmem>>, %arg6: memref<128x128xf32, #tpu.memory_space<vmem>>) attributes {dimension_semantics = [#tpu.dimension_semantics<parallel>, #tpu.dimension_semantics<arbitrary>], iteration_bounds = array<i64: 1, 1>, scalar_prefetch = 0 : i64, scratch_operands = 1 : i64, tpu.core_type = #tpu.core_type<tc>, window_params = [{transform_indices = @transform_0, window_bounds = array<i64: 128, 128>}, {pipeline_mode = #tpu.pipeline_mode<synchronous>, transform_indices = @transform_1, window_bounds = array<i64: 128, 128>}, {pipeline_mode = #tpu.pipeline_mode<synchronous>, transform_indices = @transform_2, window_bounds = array<i64: 2, 128>}, {transform_indices = @transform_3, window_bounds = array<i64: 128, 128>}]} {
    %c0_i32 = arith.constant 0 : i32
    %0 = arith.cmpi eq, %arg1, %c0_i32 : i32
    %1 = arith.extui %0 : i1 to i32
    %c0_i32_0 = arith.constant 0 : i32
    %2 = arith.cmpi ne, %1, %c0_i32_0 : i32
    scf.if %2 {
      %cst_9 = arith.constant 0.000000e+00 : f32
      %15 = vector.broadcast %cst_9 : f32 to vector<128x128xf32>
      %c0_10 = arith.constant 0 : index
      %c0_11 = arith.constant 0 : index
      %16 = vector.load %arg6[%c0_10, %c0_11] : memref<128x128xf32, #tpu.memory_space<vmem>>, vector<128x128xf32>
      tpu.vector_store %arg6[%c0_10, %c0_11], %15 {strides = array<i32>} : memref<128x128xf32, #tpu.memory_space<vmem>>, vector<128x128xf32>,
    } else {
    }
    %c0 = arith.constant 0 : index
    %c0_1 = arith.constant 0 : index
    %3 = vector.load %arg2[%c0, %c0_1] : memref<128x128xf32, #tpu.memory_space<vmem>>, vector<128x128xf32>
    %c128_i32 = arith.constant 128 : i32
    %4 = arith.muli %arg1, %c128_i32 : i32
    %5 = tpu.assume_multiple %4, 128 : i32
    %6 = arith.index_cast %5 : i32 to index
    %c0_2 = arith.constant 0 : index
    %7 = vector.load %arg3[%6, %c0_2] : memref<128x128xf32, #tpu.memory_space<vmem>>, vector<128x128xf32>
    %c0_3 = arith.constant 0 : index
    %c0_4 = arith.constant 0 : index
    %8 = vector.load %arg6[%c0_3, %c0_4] : memref<128x128xf32, #tpu.memory_space<vmem>>, vector<128x128xf32>
    %cst = arith.constant dense<0.000000e+00> : vector<128x128xf32>
    %9 = tpu.matmul %3, %7, %cst {dimension_numbers = #tpu.dot_dimension_numbers<[1], [0], [0], [1], [0, 0, 1, 1], [], []>} : vector<128x128xf32>, vector<128x128xf32>, vector<128x128xf32> -> vector<128x128xf32>
    %10 = arith.addf %8, %9 : vector<128x128xf32>
    %c0_5 = arith.constant 0 : index
    %c0_6 = arith.constant 0 : index
    %11 = vector.load %arg6[%c0_5, %c0_6] : memref<128x128xf32, #tpu.memory_space<vmem>>, vector<128x128xf32>
    tpu.vector_store %arg6[%c0_5, %c0_6], %10 {strides = array<i32>} : memref<128x128xf32, #tpu.memory_space<vmem>>, vector<128x128xf32>,
    %c0_i32_7 = arith.constant 0 : i32
    %12 = arith.cmpi eq, %arg1, %c0_i32_7 : i32
    %13 = arith.extui %12 : i1 to i32
    %c0_i32_8 = arith.constant 0 : i32
    %14 = arith.cmpi ne, %13, %c0_i32_8 : i32
    scf.if %14 {
      %c0_9 = arith.constant 0 : index
      %c0_10 = arith.constant 0 : index
      %15 = vector.load %arg6[%c0_9, %c0_10] : memref<128x128xf32, #tpu.memory_space<vmem>>, vector<128x128xf32>
      %c0_11 = arith.constant 0 : index
      %c0_12 = arith.constant 0 : index
      %16 = vector.load %arg4[%c0_11, %c0_12] : memref<2x128xf32, #tpu.memory_space<vmem>>, vector<1x128xf32>
      %17 = vector.broadcast %16 : vector<1x128xf32> to vector<128x128xf32>
      %18 = arith.addf %15, %17 : vector<128x128xf32>
      %cst_13 = arith.constant 0.000000e+00 : f32
      %19 = vector.broadcast %cst_13 : f32 to vector<128x128xf32>
      %20 = arith.cmpf ogt, %18, %19 : vector<128x128xf32>
      %c1 = arith.constant 1 : index
      %c0_14 = arith.constant 0 : index
      %21 = vector.load %arg4[%c1, %c0_14] : memref<2x128xf32, #tpu.memory_space<vmem>>, vector<1x128xf32>
      %22 = vector.broadcast %21 : vector<1x128xf32> to vector<128x128xf32>
      %23 = arith.mulf %22, %18 : vector<128x128xf32>
      %24 = arith.select %20, %18, %23 : vector<128x128xi1>, vector<128x128xf32>
      %c0_15 = arith.constant 0 : index
      %c0_16 = arith.constant 0 : index
      %25 = vector.load %arg5[%c0_15, %c0_16] : memref<128x128xf32, #tpu.memory_space<vmem>>, vector<128x128xf32>
      tpu.vector_store %arg5[%c0_15, %c0_16], %24 {strides = array<i32>} : memref<128x128xf32, #tpu.memory_space<vmem>>, vector<128x128xf32>,
    } else {
    }
    return
  }
  func.func @transform_0(%arg0: i32, %arg1: i32) -> (i32, i32) {
    %c0_i32 = arith.constant 0 : i32
    return %arg0, %arg1 : i32, i32
  }
  func.func @transform_1(%arg0: i32, %arg1: i32) -> (i32, i32) {
    %c0_i32 = arith.constant 0 : i32
    %c0_i32_0 = arith.constant 0 : i32
    %c0_i32_1 = arith.constant 0 : i32
    return %c0_i32, %c0_i32_0 : i32, i32
  }
  func.func @transform_2(%arg0: i32, %arg1: i32) -> (i32, i32) {
    %c0_i32 = arith.constant 0 : i32
    %c0_i32_0 = arith.constant 0 : i32
    %c0_i32_1 = arith.constant 0 : i32
    return %c0_i32, %c0_i32_0 : i32, i32
  }
  func.func @transform_3(%arg0: i32, %arg1: i32) -> (i32, i32) {
    %c0_i32 = arith.constant 0 : i32
    %c0_i32_0 = arith.constant 0 : i32
    return %arg0, %c0_i32 : i32, i32
  }
}

</mosaic_0001>

<llo_original>
// kernel: tpu_custom_call.1
$region0: #{tpu_custom_call.1}
  #allocation0 [shape = 'u32[]', space=smem, size = 0x4, offset = 0x4, fixed_abs, tag = 'smem constant byte address 0x4 - core index']
  #allocation1 [shape = 'u32[144,128]{1,0:T(1,128)}', space=vmem, size = 0x12000, scoped, tag = 'internal scratch']
  #allocation2 [shape = 'f32[128,128]{1,0:T(8,128)}', space=vmem, size = 0x10000, scoped, tag = 'scratch operand']
  %s0 = inlined_call_operand.hbm [shape: f32[128,128], index: 0, kind: input, shape index: {}]
  %s1 = inlined_call_operand.hbm [shape: f32[128,128], index: 1, kind: input, shape index: {}]
  %s2 = inlined_call_operand.vmem [shape: f32[2,128], index: 2, kind: input, shape index: {}]
  %s3 = inlined_call_operand.hbm [shape: f32[128,128], index: 3, kind: output, shape index: {}]
  %s4 = sld [smem:[#allocation0]]
  $region38: #{tpu_custom_call.1} parent=0
    _
  %s6 = ssub.s32 1, %s4
  %s7 = scalar_select 0, %s6, %s4
  $region1: #{tpu_custom_call.1} parent=0
    #allocation3 [shape = 'u8[65536]{0}', space=vmem, size = 0x10000, scoped, tag = 'input window, operand 0, single buffered']
    #allocation4 [shape = 's32[1]{0}', space=sflag, size = 0x4, scoped, tag = 'scoped memory for tpu_custom_call.1']
    #allocation5 [shape = 's32[1]{0}', space=sflag, size = 0x4, scoped, tag = 'scoped memory for tpu_custom_call.1']
    #allocation6 [shape = 'u8[65536]{0}', space=vmem, size = 0x10000, scoped, tag = 'input window, operand 1, single buffered']
    #allocation7 [shape = 's32[1]{0}', space=sflag, size = 0x4, scoped, tag = 'scoped memory for tpu_custom_call.1']
    #allocation8 [shape = 'u8[65536]{0}', space=vmem, size = 0x10000, scoped, tag = 'output window, operand 0, single buffered']
    %8 = vsyncpa [#allocation4], 0
    %9 = vsyncpa [#allocation7], 0
    %10 = vsyncpa [#allocation5], 0
    // Predicated region
    $region2: #{tpu_custom_call.1} parent=1 // pred_check
      _
    $region3: #{tpu_custom_call.1} parent=1 // pred_check_branch
      %12 = sbr.rel (0) target = $region5
    $region4: #{tpu_custom_call.1} parent=1 // pred_region
      %s14 = ssub.s32 2048, 2048
      %15 = vsyncadd [#allocation4], %s14
      %s16 = sshll.u32 [#allocation3], 4
      %s17 = int_to_ptr.vmem [resolvable:$true] %s16
      %22 = dma.hbm_to_vmem [thread:$0]  %s0, 2048, %s17, [#allocation4], 128, 128, 8
    $region5: #{tpu_custom_call.1} parent=1 // pred_fallthru
      _
    // Predicated region
    $region6: #{tpu_custom_call.1} parent=1 // pred_check
      _
    $region7: #{tpu_custom_call.1} parent=1 // pred_check_branch
      %24 = sbr.rel (0) target = $region9
    $region8: #{tpu_custom_call.1} parent=1 // pred_region
      %s26 = ssub.s32 2048, 2048
      %27 = vsyncadd [#allocation7], %s26
      %s28 = sshll.u32 [#allocation6], 4
      %s29 = int_to_ptr.vmem [resolvable:$true] %s28
      %34 = dma.hbm_to_vmem [thread:$0]  %s1, 2048, %s29, [#allocation7], 128, 128, 8
    $region9: #{tpu_custom_call.1} parent=1 // pred_fallthru
      _
    // Predicated region
    $region10: #{tpu_custom_call.1} parent=1 // pred_check
      _
    $region11: #{tpu_custom_call.1} parent=1 // pred_check_branch
      %36 = sbr.rel (0) target = $region13
    $region12: #{tpu_custom_call.1} parent=1 // pred_region
      _
    $region13: #{tpu_custom_call.1} parent=1 // pred_fallthru
      _
    // Predicated region
    $region14: #{tpu_custom_call.1} parent=1 // pred_check
      _
    $region15: #{tpu_custom_call.1} parent=1 // pred_check_branch
      %38 = sbr.rel (0) target = $region17
    $region16: #{tpu_custom_call.1} parent=1 // pred_region
      %39 = dma.done [#allocation4], 2048
    $region17: #{tpu_custom_call.1} parent=1 // pred_fallthru
      _
    // Predicated region
    $region18: #{tpu_custom_call.1} parent=1 // pred_check
      _
    $region19: #{tpu_custom_call.1} parent=1 // pred_check_branch
      %41 = sbr.rel (0) target = $region21
    $region20: #{tpu_custom_call.1} parent=1 // pred_region
      %42 = dma.done [#allocation7], 2048
    $region21: #{tpu_custom_call.1} parent=1 // pred_fallthru
      _
    %p43 = scmp.eq.s32.totalorder 0, 0
    // Predicated region
    $region22: #{tpu_custom_call.1} parent=1 // pred_check
      %p44 = pneg %p43
    $region23: #{tpu_custom_call.1} parent=1 // pred_check_branch
      %46 = sbr.rel (%p44) target = $region25
    $region24: #{tpu_custom_call.1} parent=1 // pred_region
      %47 = vst [vmem:[#allocation2] sm:$0xff] 0.0
      %48 = vst [vmem:[#allocation2 + $0x8] sm:$0xff] 0.0
      %49 = vst [vmem:[#allocation2 + $0x10] sm:$0xff] 0.0
      %50 = vst [vmem:[#allocation2 + $0x18] sm:$0xff] 0.0
      %51 = vst [vmem:[#allocation2 + $0x20] sm:$0xff] 0.0
      %52 = vst [vmem:[#allocation2 + $0x28] sm:$0xff] 0.0
      %53 = vst [vmem:[#allocation2 + $0x30] sm:$0xff] 0.0
      %54 = vst [vmem:[#allocation2 + $0x38] sm:$0xff] 0.0
      %55 = vst [vmem:[#allocation2 + $0x40] sm:$0xff] 0.0
      %56 = vst [vmem:[#allocation2 + $0x48] sm:$0xff] 0.0
      %57 = vst [vmem:[#allocation2 + $0x50] sm:$0xff] 0.0
      %58 = vst [vmem:[#allocation2 + $0x58] sm:$0xff] 0.0
      %59 = vst [vmem:[#allocation2 + $0x60] sm:$0xff] 0.0
      %60 = vst [vmem:[#allocation2 + $0x68] sm:$0xff] 0.0
      %61 = vst [vmem:[#allocation2 + $0x70] sm:$0xff] 0.0
      %62 = vst [vmem:[#allocation2 + $0x78] sm:$0xff] 0.0
    $region25: #{tpu_custom_call.1} parent=1 // pred_fallthru
      _
    %v63 = vld [vmem:[#allocation3] sm:$0xff]
    %v64 = vld [vmem:[#allocation3 + $0x8] sm:$0xff]
    %v65 = vld [vmem:[#allocation3 + $0x10] sm:$0xff]
    %v66 = vld [vmem:[#allocation3 + $0x18] sm:$0xff]
    %v67 = vld [vmem:[#allocation3 + $0x20] sm:$0xff]
    %v68 = vld [vmem:[#allocation3 + $0x28] sm:$0xff]
    %v69 = vld [vmem:[#allocation3 + $0x30] sm:$0xff]
    %v70 = vld [vmem:[#allocation3 + $0x38] sm:$0xff]
    %v71 = vld [vmem:[#allocation3 + $0x40] sm:$0xff]
    %v72 = vld [vmem:[#allocation3 + $0x48] sm:$0xff]
    %v73 = vld [vmem:[#allocation3 + $0x50] sm:$0xff]
    %v74 = vld [vmem:[#allocation3 + $0x58] sm:$0xff]
    %v75 = vld [vmem:[#allocation3 + $0x60] sm:$0xff]
    %v76 = vld [vmem:[#allocation3 + $0x68] sm:$0xff]
    %v77 = vld [vmem:[#allocation3 + $0x70] sm:$0xff]
    %v78 = vld [vmem:[#allocation3 + $0x78] sm:$0xff]
    %s79 = smul.u32 0, 128
    %s80 = scalar_lea.vmem [#allocation6], %s79
    %v81 = vld [vmem:[%s80] sm:$0xff]
    %v82 = vld [vmem:[%s80 + $0x8] sm:$0xff]
    %v83 = vld [vmem:[%s80 + $0x10] sm:$0xff]
    %v84 = vld [vmem:[%s80 + $0x18] sm:$0xff]
    %v85 = vld [vmem:[%s80 + $0x20] sm:$0xff]
    %v86 = vld [vmem:[%s80 + $0x28] sm:$0xff]
    %v87 = vld [vmem:[%s80 + $0x30] sm:$0xff]
    %v88 = vld [vmem:[%s80 + $0x38] sm:$0xff]
    %v89 = vld [vmem:[%s80 + $0x40] sm:$0xff]
    %v90 = vld [vmem:[%s80 + $0x48] sm:$0xff]
    %v91 = vld [vmem:[%s80 + $0x50] sm:$0xff]
    %v92 = vld [vmem:[%s80 + $0x58] sm:$0xff]
    %v93 = vld [vmem:[%s80 + $0x60] sm:$0xff]
    %v94 = vld [vmem:[%s80 + $0x68] sm:$0xff]
    %v95 = vld [vmem:[%s80 + $0x70] sm:$0xff]
    %v96 = vld [vmem:[%s80 + $0x78] sm:$0xff]
    %v97 = vld [vmem:[#allocation2] sm:$0xff]
    %v98 = vld [vmem:[#allocation2 + $0x8] sm:$0xff]
    %v99 = vld [vmem:[#allocation2 + $0x10] sm:$0xff]
    %v100 = vld [vmem:[#allocation2 + $0x18] sm:$0xff]
    %v101 = vld [vmem:[#allocation2 + $0x20] sm:$0xff]
    %v102 = vld [vmem:[#allocation2 + $0x28] sm:$0xff]
    %v103 = vld [vmem:[#allocation2 + $0x30] sm:$0xff]
    %v104 = vld [vmem:[#allocation2 + $0x38] sm:$0xff]
    %v105 = vld [vmem:[#allocation2 + $0x40] sm:$0xff]
    %v106 = vld [vmem:[#allocation2 + $0x48] sm:$0xff]
    %v107 = vld [vmem:[#allocation2 + $0x50] sm:$0xff]
    %v108 = vld [vmem:[#allocation2 + $0x58] sm:$0xff]
    %v109 = vld [vmem:[#allocation2 + $0x60] sm:$0xff]
    %v110 = vld [vmem:[#allocation2 + $0x68] sm:$0xff]
    %v111 = vld [vmem:[#allocation2 + $0x70] sm:$0xff]
    %v112 = vld [vmem:[#allocation2 + $0x78] sm:$0xff]
    %113 = vmatprep.subr.mxu0 0.0
    %114 = vmatpush1.msra.mxu0 %v81
    %115 = vmatprep.subr.mxu0 0.0
    %116 = vmatpush1.msra.mxu0 %v82
    %117 = vmatprep.subr.mxu0 0.0
    %118 = vmatpush1.msra.mxu0 %v83
    %119 = vmatprep.subr.mxu0 0.0
    %120 = vmatpush1.msra.mxu0 %v84
    %121 = vmatprep.subr.mxu0 0.0
    %122 = vmatpush1.msra.mxu0 %v85
    %123 = vmatprep.subr.mxu0 0.0
    %124 = vmatpush1.msra.mxu0 %v86
    %125 = vmatprep.subr.mxu0 0.0
    %126 = vmatpush1.msra.mxu0 %v87
    %127 = vmatprep.subr.mxu0 0.0
    %128 = vmatpush1.msra.mxu0 %v88
    %129 = vmatprep.subr.mxu0 0.0
    %130 = vmatpush1.msra.mxu0 %v89
    %131 = vmatprep.subr.mxu0 0.0
    %132 = vmatpush1.msra.mxu0 %v90
    %133 = vmatprep.subr.mxu0 0.0
    %134 = vmatpush1.msra.mxu0 %v91
    %135 = vmatprep.subr.mxu0 0.0
    %136 = vmatpush1.msra.mxu0 %v92
    %137 = vmatprep.subr.mxu0 0.0
    %138 = vmatpush1.msra.mxu0 %v93
    %139 = vmatprep.subr.mxu0 0.0
    %140 = vmatpush1.msra.mxu0 %v94
    %141 = vmatprep.subr.mxu0 0.0
    %142 = vmatpush1.msra.mxu0 %v95
    %143 = vmatprep.subr.mxu0 0.0
    %144 = vmatpush1.msra.mxu0 %v96
    %145 = vmatprep.subr.mxu0 0.0
    %146 = vmatpush1.msra.mxu0 0.0
    %147 = vmatprep.subr.mxu0 0.0
    %148 = vmatpush1.msra.mxu0 0.0
    %149 = vmatprep.subr.mxu0 0.0
    %150 = vmatpush1.msra.mxu0 0.0
    %151 = vmatprep.subr.mxu0 0.0
    %152 = vmatpush1.msra.mxu0 0.0
    %153 = vmatprep.subr.mxu0 0.0
    %154 = vmatpush1.msra.mxu0 0.0
    %155 = vmatprep.subr.mxu0 0.0
    %156 = vmatpush1.msra.mxu0 0.0
    %157 = vmatprep.subr.mxu0 0.0
    %158 = vmatpush1.msra.mxu0 0.0
    %159 = vmatprep.subr.mxu0 0.0
    %160 = vmatpush1.msra.mxu0 0.0
    %161 = vmatprep.subr.mxu0 0.0
    %162 = vmatpush1.msra.mxu0 0.0
    %163 = vmatprep.subr.mxu0 0.0
    %164 = vmatpush1.msra.mxu0 0.0
    %165 = vmatprep.subr.mxu0 0.0
    %166 = vmatpush1.msra.mxu0 0.0
    %167 = vmatprep.subr.mxu0 0.0
    %168 = vmatpush1.msra.mxu0 0.0
    %169 = vmatprep.subr.mxu0 0.0
    %170 = vmatpush1.msra.mxu0 0.0
    %171 = vmatprep.subr.mxu0 0.0
    %172 = vmatpush1.msra.mxu0 0.0
    %173 = vmatprep.subr.mxu0 0.0
    %174 = vmatpush1.msra.mxu0 0.0
    %175 = vmatprep.subr.mxu0 0.0
    %176 = vmatpush1.msra.mxu0 0.0
    %177 = vmatprep.mubr.f32.mxu0 0.0
    %178 = vmatmul.mubr.f32.gmra.mrb[0].mxu0 %v63
    %v179 = vpop.f32.mrb[0].mxu0
    %v180 = vadd.f32 0.0, %v179
    %v181 = vpop.f32.mrb[0].mxu0
    %182 = vmatprep.mubr.f32.mxu0 0.0
    %183 = vmatmul.mubr.f32.gmra.mrb[0].mxu0 %v64
    %v184 = vpop.f32.mrb[0].mxu0
    %v185 = vadd.f32 0.0, %v184
    %v186 = vpop.f32.mrb[0].mxu0
    %187 = vmatprep.mubr.f32.mxu0 0.0
    %188 = vmatmul.mubr.f32.gmra.mrb[0].mxu0 %v65
    %v189 = vpop.f32.mrb[0].mxu0
    %v190 = vadd.f32 0.0, %v189
    %v191 = vpop.f32.mrb[0].mxu0
    %192 = vmatprep.mubr.f32.mxu0 0.0
    %193 = vmatmul.mubr.f32.gmra.mrb[0].mxu0 %v66
    %v194 = vpop.f32.mrb[0].mxu0
    %v195 = vadd.f32 0.0, %v194
    %v196 = vpop.f32.mrb[0].mxu0
    %197 = vmatprep.mubr.f32.mxu0 0.0
    %198 = vmatmul.mubr.f32.gmra.mrb[0].mxu0 %v67
    %v199 = vpop.f32.mrb[0].mxu0
    %v200 = vadd.f32 0.0, %v199
    %v201 = vpop.f32.mrb[0].mxu0
    %202 = vmatprep.mubr.f32.mxu0 0.0
    %203 = vmatmul.mubr.f32.gmra.mrb[0].mxu0 %v68
    %v204 = vpop.f32.mrb[0].mxu0
    %v205 = vadd.f32 0.0, %v204
    %v206 = vpop.f32.mrb[0].mxu0
    %207 = vmatprep.mubr.f32.mxu0 0.0
    %208 = vmatmul.mubr.f32.gmra.mrb[0].mxu0 %v69
    %v209 = vpop.f32.mrb[0].mxu0
    %v210 = vadd.f32 0.0, %v209
    %v211 = vpop.f32.mrb[0].mxu0
    %212 = vmatprep.mubr.f32.mxu0 0.0
    %213 = vmatmul.mubr.f32.gmra.mrb[0].mxu0 %v70
    %v214 = vpop.f32.mrb[0].mxu0
    %v215 = vadd.f32 0.0, %v214
    %v216 = vpop.f32.mrb[0].mxu0
    %217 = vmatprep.mubr.f32.mxu0 0.0
    %218 = vmatmul.mubr.f32.gmra.mrb[0].mxu0 %v71
    %v219 = vpop.f32.mrb[0].mxu0
    %v220 = vadd.f32 0.0, %v219
    %v221 = vpop.f32.mrb[0].mxu0
    %222 = vmatprep.mubr.f32.mxu0 0.0
    %223 = vmatmul.mubr.f32.gmra.mrb[0].mxu0 %v72
    %v224 = vpop.f32.mrb[0].mxu0
    %v225 = vadd.f32 0.0, %v224
    %v226 = vpop.f32.mrb[0].mxu0
    %227 = vmatprep.mubr.f32.mxu0 0.0
    %228 = vmatmul.mubr.f32.gmra.mrb[0].mxu0 %v73
    %v229 = vpop.f32.mrb[0].mxu0
    %v230 = vadd.f32 0.0, %v229
    %v231 = vpop.f32.mrb[0].mxu0
    %232 = vmatprep.mubr.f32.mxu0 0.0
    %233 = vmatmul.mubr.f32.gmra.mrb[0].mxu0 %v74
    %v234 = vpop.f32.mrb[0].mxu0
    %v235 = vadd.f32 0.0, %v234
    %v236 = vpop.f32.mrb[0].mxu0
    %237 = vmatprep.mubr.f32.mxu0 0.0
    %238 = vmatmul.mubr.f32.gmra.mrb[0].mxu0 %v75
    %v239 = vpop.f32.mrb[0].mxu0
    %v240 = vadd.f32 0.0, %v239
    %v241 = vpop.f32.mrb[0].mxu0
    %242 = vmatprep.mubr.f32.mxu0 0.0
    %243 = vmatmul.mubr.f32.gmra.mrb[0].mxu0 %v76
    %v244 = vpop.f32.mrb[0].mxu0
    %v245 = vadd.f32 0.0, %v244
    %v246 = vpop.f32.mrb[0].mxu0
    %247 = vmatprep.mubr.f32.mxu0 0.0
    %248 = vmatmul.mubr.f32.gmra.mrb[0].mxu0 %v77
    %v249 = vpop.f32.mrb[0].mxu0
    %v250 = vadd.f32 0.0, %v249
    %v251 = vpop.f32.mrb[0].mxu0
    %252 = vmatprep.mubr.f32.mxu0 0.0
    %253 = vmatmul.mubr.f32.gmra.mrb[0].mxu0 %v78
    %v254 = vpop.f32.mrb[0].mxu0
    %v255 = vadd.f32 0.0, %v254
    %v256 = vpop.f32.mrb[0].mxu0
    %257 = vdwg.mxu0
    %v258 = vadd.f32 %v97, %v180
    %v259 = vadd.f32 %v98, %v185
    %v260 = vadd.f32 %v99, %v190
    %v261 = vadd.f32 %v100, %v195
    %v262 = vadd.f32 %v101, %v200
    %v263 = vadd.f32 %v102, %v205
    %v264 = vadd.f32 %v103, %v210
    %v265 = vadd.f32 %v104, %v215
    %v266 = vadd.f32 %v105, %v220
    %v267 = vadd.f32 %v106, %v225
    %v268 = vadd.f32 %v107, %v230
    %v269 = vadd.f32 %v108, %v235
    %v270 = vadd.f32 %v109, %v240
    %v271 = vadd.f32 %v110, %v245
    %v272 = vadd.f32 %v111, %v250
    %v273 = vadd.f32 %v112, %v255
    %274 = vst [vmem:[#allocation2] sm:$0xff] %v258
    %275 = vst [vmem:[#allocation2 + $0x8] sm:$0xff] %v259
    %276 = vst [vmem:[#allocation2 + $0x10] sm:$0xff] %v260
    %277 = vst [vmem:[#allocation2 + $0x18] sm:$0xff] %v261
    %278 = vst [vmem:[#allocation2 + $0x20] sm:$0xff] %v262
    %279 = vst [vmem:[#allocation2 + $0x28] sm:$0xff] %v263
    %280 = vst [vmem:[#allocation2 + $0x30] sm:$0xff] %v264
    %281 = vst [vmem:[#allocation2 + $0x38] sm:$0xff] %v265
    %282 = vst [vmem:[#allocation2 + $0x40] sm:$0xff] %v266
    %283 = vst [vmem:[#allocation2 + $0x48] sm:$0xff] %v267
    %284 = vst [vmem:[#allocation2 + $0x50] sm:$0xff] %v268
    %285 = vst [vmem:[#allocation2 + $0x58] sm:$0xff] %v269
    %286 = vst [vmem:[#allocation2 + $0x60] sm:$0xff] %v270
    %287 = vst [vmem:[#allocation2 + $0x68] sm:$0xff] %v271
    %288 = vst [vmem:[#allocation2 + $0x70] sm:$0xff] %v272
    %289 = vst [vmem:[#allocation2 + $0x78] sm:$0xff] %v273
    // Predicated region
    $region26: #{tpu_custom_call.1} parent=1 // pred_check
      %p290 = pneg %p43
    $region27: #{tpu_custom_call.1} parent=1 // pred_check_branch
      %292 = sbr.rel (%p290) target = $region29
    $region28: #{tpu_custom_call.1} parent=1 // pred_region
      %v293 = vld [vmem:[#allocation2] sm:$0xff]
      %v294 = vld [vmem:[#allocation2 + $0x8] sm:$0xff]
      %v295 = vld [vmem:[#allocation2 + $0x10] sm:$0xff]
      %v296 = vld [vmem:[#allocation2 + $0x18] sm:$0xff]
      %v297 = vld [vmem:[#allocation2 + $0x20] sm:$0xff]
      %v298 = vld [vmem:[#allocation2 + $0x28] sm:$0xff]
      %v299 = vld [vmem:[#allocation2 + $0x30] sm:$0xff]
      %v300 = vld [vmem:[#allocation2 + $0x38] sm:$0xff]
      %v301 = vld [vmem:[#allocation2 + $0x40] sm:$0xff]
      %v302 = vld [vmem:[#allocation2 + $0x48] sm:$0xff]
      %v303 = vld [vmem:[#allocation2 + $0x50] sm:$0xff]
      %v304 = vld [vmem:[#allocation2 + $0x58] sm:$0xff]
      %v305 = vld [vmem:[#allocation2 + $0x60] sm:$0xff]
      %v306 = vld [vmem:[#allocation2 + $0x68] sm:$0xff]
      %v307 = vld [vmem:[#allocation2 + $0x70] sm:$0xff]
      %v308 = vld [vmem:[#allocation2 + $0x78] sm:$0xff]
      %v309 = vld [vmem:[%s2] sm:$0x1]
      %v310 = vlaneseq
      %v311 = vshrl.u32 %v310, 7
      %v312 = vsub.s32 0, %v311
      %v313 = vrot.slane %v309, %v312
      %v314 = vadd.f32 %v293, %v313
      %v315 = vadd.f32 %v294, %v313
      %v316 = vadd.f32 %v295, %v313
      %v317 = vadd.f32 %v296, %v313
      %v318 = vadd.f32 %v297, %v313
      %v319 = vadd.f32 %v298, %v313
      %v320 = vadd.f32 %v299, %v313
      %v321 = vadd.f32 %v300, %v313
      %v322 = vadd.f32 %v301, %v313
      %v323 = vadd.f32 %v302, %v313
      %v324 = vadd.f32 %v303, %v313
      %v325 = vadd.f32 %v304, %v313
      %v326 = vadd.f32 %v305, %v313
      %v327 = vadd.f32 %v306, %v313
      %v328 = vadd.f32 %v307, %v313
      %v329 = vadd.f32 %v308, %v313
      %vm330 = vcmp.gt.f32.partialorder %v314, 0.0
      %vm331 = vcmp.gt.f32.partialorder %v315, 0.0
      %vm332 = vcmp.gt.f32.partialorder %v316, 0.0
      %vm333 = vcmp.gt.f32.partialorder %v317, 0.0
      %vm334 = vcmp.gt.f32.partialorder %v318, 0.0
      %vm335 = vcmp.gt.f32.partialorder %v319, 0.0
      %vm336 = vcmp.gt.f32.partialorder %v320, 0.0
      %vm337 = vcmp.gt.f32.partialorder %v321, 0.0
      %vm338 = vcmp.gt.f32.partialorder %v322, 0.0
      %vm339 = vcmp.gt.f32.partialorder %v323, 0.0
      %vm340 = vcmp.gt.f32.partialorder %v324, 0.0
      %vm341 = vcmp.gt.f32.partialorder %v325, 0.0
      %vm342 = vcmp.gt.f32.partialorder %v326, 0.0
      %vm343 = vcmp.gt.f32.partialorder %v327, 0.0
      %vm344 = vcmp.gt.f32.partialorder %v328, 0.0
      %vm345 = vcmp.gt.f32.partialorder %v329, 0.0
      %v346 = vld [vmem:[%s2 + $0x1] sm:$0x1]
      %v347 = vlaneseq
      %v348 = vshrl.u32 %v347, 7
      %v349 = vsub.s32 0, %v348
      %v350 = vrot.slane %v346, %v349
      %v351 = vmul.f32 %v350, %v314
      %v352 = vmul.f32 %v350, %v315
      %v353 = vmul.f32 %v350, %v316
      %v354 = vmul.f32 %v350, %v317
      %v355 = vmul.f32 %v350, %v318
      %v356 = vmul.f32 %v350, %v319
      %v357 = vmul.f32 %v350, %v320
      %v358 = vmul.f32 %v350, %v321
      %v359 = vmul.f32 %v350, %v322
      %v360 = vmul.f32 %v350, %v323
      %v361 = vmul.f32 %v350, %v324
      %v362 = vmul.f32 %v350, %v325
      %v363 = vmul.f32 %v350, %v326
      %v364 = vmul.f32 %v350, %v327
      %v365 = vmul.f32 %v350, %v328
      %v366 = vmul.f32 %v350, %v329
      %v367 = vsel %vm330, %v314, %v351
      %v368 = vsel %vm331, %v315, %v352
      %v369 = vsel %vm332, %v316, %v353
      %v370 = vsel %vm333, %v317, %v354
      %v371 = vsel %vm334, %v318, %v355
      %v372 = vsel %vm335, %v319, %v356
      %v373 = vsel %vm336, %v320, %v357
      %v374 = vsel %vm337, %v321, %v358
      %v375 = vsel %vm338, %v322, %v359
      %v376 = vsel %vm339, %v323, %v360
      %v377 = vsel %vm340, %v324, %v361
      %v378 = vsel %vm341, %v325, %v362
      %v379 = vsel %vm342, %v326, %v363
      %v380 = vsel %vm343, %v327, %v364
      %v381 = vsel %vm344, %v328, %v365
      %v382 = vsel %vm345, %v329, %v366
      %383 = vst [vmem:[#allocation8] sm:$0xff] %v367
      %384 = vst [vmem:[#allocation8 + $0x8] sm:$0xff] %v368
      %385 = vst [vmem:[#allocation8 + $0x10] sm:$0xff] %v369
      %386 = vst [vmem:[#allocation8 + $0x18] sm:$0xff] %v370
      %387 = vst [vmem:[#allocation8 + $0x20] sm:$0xff] %v371
      %388 = vst [vmem:[#allocation8 + $0x28] sm:$0xff] %v372
      %389 = vst [vmem:[#allocation8 + $0x30] sm:$0xff] %v373
      %390 = vst [vmem:[#allocation8 + $0x38] sm:$0xff] %v374
      %391 = vst [vmem:[#allocation8 + $0x40] sm:$0xff] %v375
      %392 = vst [vmem:[#allocation8 + $0x48] sm:$0xff] %v376
      %393 = vst [vmem:[#allocation8 + $0x50] sm:$0xff] %v377
      %394 = vst [vmem:[#allocation8 + $0x58] sm:$0xff] %v378
      %395 = vst [vmem:[#allocation8 + $0x60] sm:$0xff] %v379
      %396 = vst [vmem:[#allocation8 + $0x68] sm:$0xff] %v380
      %397 = vst [vmem:[#allocation8 + $0x70] sm:$0xff] %v381
      %398 = vst [vmem:[#allocation8 + $0x78] sm:$0xff] %v382
    $region29: #{tpu_custom_call.1} parent=1 // pred_fallthru
      _
    // Predicated region
    $region30: #{tpu_custom_call.1} parent=1 // pred_check
      _
    $region31: #{tpu_custom_call.1} parent=1 // pred_check_branch
      %400 = sbr.rel (0) target = $region33
    $region32: #{tpu_custom_call.1} parent=1 // pred_region
      %s402 = ssub.s32 2048, 2048
      %403 = vsyncadd [#allocation5], %s402
      %s404 = sshll.u32 [#allocation8], 4
      %s405 = int_to_ptr.vmem [resolvable:$true] %s404
      %410 = dma.vmem_to_hbm [thread:$0]  %s405, 2048, %s3, [#allocation5], 128, 128, 8
    $region33: #{tpu_custom_call.1} parent=1 // pred_fallthru
      _
    // Predicated region
    $region34: #{tpu_custom_call.1} parent=1 // pred_check
      _
    $region35: #{tpu_custom_call.1} parent=1 // pred_check_branch
      %412 = sbr.rel (0) target = $region37
    $region36: #{tpu_custom_call.1} parent=1 // pred_region
      %413 = dma.done [#allocation5], 2048
    $region37: #{tpu_custom_call.1} parent=1 // pred_fallthru
      _
    %414 = vsyncpa [#allocation4], 1
    %415 = vsyncpa [#allocation7], 1
    %416 = vsyncpa [#allocation5], 1

</llo_original>
